<compile_context>
chip_gen: v7x
topology: tpu7x:2x2x1
jax: 0.10.0
libtpu: 0.0.40
codegen_flags: <defaults>
</compile_context>

<pallas_src>
import functools
import math

import jax
import jax.numpy as jnp
from jax.experimental import pallas as pl
from jax.experimental.pallas import tpu as pltpu

BN_EPS = 1e-5


# ---------------------------------------------------------------------------
# Fused SERN kernel: conv1+bn1+relu | downsample+bn (shared LHS), conv2+bn2,
# SE channel gate, residual add, final relu -- all in one grid step per batch.
# ---------------------------------------------------------------------------
def _sern_kernel(x_ref, w1d_ref, b1d_ref, w2_ref, b2_ref, se1_ref, se2t_ref,
                 o_ref, *, cout):
    x = x_ref[0]                                          # (T, Cin) bf16

    # conv1(+bn1) and downsample(+bn) share the LHS -> one MXU pass with N = 2*Cout.
    y = jnp.dot(x, w1d_ref[...], preferred_element_type=jnp.float32) + b1d_ref[...]
    out1 = jnp.maximum(y[:, :cout], 0.0)                  # relu(bn1(conv1(x)))
    res = y[:, cout:]                                     # down_bn(down_conv(x))

    # conv2 + bn2 (bf16 MXU inputs, fp32 accumulate, fp32 shift epilogue).
    out2 = jnp.dot(out1.astype(w2_ref.dtype), w2_ref[...],
                   preferred_element_type=jnp.float32) + b2_ref[...]   # (T, Cout)

    # SE layer: squeeze (avg over time) -> FC/ReLU -> FC/Sigmoid -> channel gate.
    # FCs are Cout x Cout//16 -- far too small for MXU passes, so implement them as
    # broadcast-mul + lane/sublane reductions (VPU/XLU).
    pooled = jnp.mean(out2, axis=0, keepdims=True)                         # (1, Cout)
    h = jnp.maximum(jnp.sum(se1_ref[...] * pooled, axis=1, keepdims=True),
                    0.0)                                                   # (red, 1)
    z = jnp.sum(se2t_ref[...] * h, axis=0, keepdims=True)                  # (1, Cout)
    gate = pl.reciprocal(1.0 + jnp.exp(-z), approx=True)                   # sigmoid (EUP)

    o_ref[0] = jnp.maximum(out2 * gate + res, 0.0)


def sern_forward(x, params):
    """x: (B, Cin, T) float32 NCW -> (B, Cout, T) float32 NCW."""
    B, cin, T = x.shape
    cout = params["w2"].shape[1]
    xt = x.transpose(0, 2, 1).astype(jnp.bfloat16)        # (B, T, Cin) bf16 MXU input

    out = pl.pallas_call(
        functools.partial(_sern_kernel, cout=cout),
        out_shape=jax.ShapeDtypeStruct((B, T, cout), jnp.float32),
        grid_spec=pltpu.PrefetchScalarGridSpec(
            num_scalar_prefetch=0,
            grid=(B,),
            in_specs=[
                pl.BlockSpec((1, T, cin), lambda b: (b, 0, 0)),
                pl.BlockSpec(params["w1d"].shape, lambda b: (0, 0)),
                pl.BlockSpec(params["b1d"].shape, lambda b: (0, 0)),
                pl.BlockSpec(params["w2"].shape, lambda b: (0, 0)),
                pl.BlockSpec(params["b2"].shape, lambda b: (0, 0)),
                pl.BlockSpec(params["se1"].shape, lambda b: (0, 0)),
                pl.BlockSpec(params["se2t"].shape, lambda b: (0, 0)),
            ],
            out_specs=pl.BlockSpec((1, T, cout), lambda b: (b, 0, 0)),
        ),
        compiler_params=pltpu.CompilerParams(
            dimension_semantics=("parallel",),   # batch elements -> both TCs on v7x
        ),
    )(xt, params["w1d"], params["b1d"], params["w2"], params["b2"],
      params["se1"], params["se2t"])
    return out.transpose(0, 2, 1)


# ---------------------------------------------------------------------------
# One-time parameter preparation: fold eval-mode BN, pre-transpose, cast to bf16.
# ---------------------------------------------------------------------------
def fold_bn(bn, conv_bias=None):
    gamma, beta, mean, var = bn
    scale = gamma / jnp.sqrt(var + BN_EPS)
    shift = beta - mean * scale
    if conv_bias is not None:
        shift = shift + conv_bias * scale
    return scale, shift


def prepare_sern_params(raw):
    """Fold BN (eval mode) into weights, concat conv1|downsample along N, cast bf16."""
    s1, b1 = fold_bn(raw["bn1"], raw["conv1_b"])
    s2, b2 = fold_bn(raw["bn2"], raw["conv2_b"])
    sd, bd = fold_bn(raw["down_bn"])
    w1 = raw["conv1_w"][:, :, 0].T * s1[None, :]          # (Cin, Cout)
    wd = raw["down_w"][:, :, 0].T * sd[None, :]           # (Cin, Cout)
    w2 = raw["conv2_w"][:, :, 0].T * s2[None, :]          # (Cout, Cout)
    return dict(
        w1d=jnp.concatenate([w1, wd], axis=1).astype(jnp.bfloat16),   # (Cin, 2*Cout)
        b1d=jnp.concatenate([b1, bd])[None, :].astype(jnp.float32),   # (1, 2*Cout)
        w2=w2.astype(jnp.bfloat16),                                   # (Cout, Cout)
        b2=b2[None, :].astype(jnp.float32),                           # (1, Cout)
        se1=raw["se_fc1"].astype(jnp.float32),                        # (red, Cout)
        se2t=raw["se_fc2"].T.astype(jnp.float32),                     # (red, Cout)
    )


# ---------------------------------------------------------------------------
# Pure-JAX fp32 reference (eval-mode BatchNorm, PyTorch semantics) for validation.
# ---------------------------------------------------------------------------
def sern_reference(x, raw):
    def bn(z, p):
        gamma, beta, mean, var = p
        inv = gamma / jnp.sqrt(var + BN_EPS)
        return (z - mean[None, :, None]) * inv[None, :, None] + beta[None, :, None]

    def conv1x1(z, w, b=None):
        y = jnp.einsum("bct,oc->bot", z, w[:, :, 0])
        return y if b is None else y + b[None, :, None]

    out = jax.nn.relu(bn(conv1x1(x, raw["conv1_w"], raw["conv1_b"]), raw["bn1"]))
    out = bn(conv1x1(out, raw["conv2_w"], raw["conv2_b"]), raw["bn2"])
    y = jnp.mean(out, axis=2)                              # (B, Cout)
    y = jax.nn.relu(y @ raw["se_fc1"].T)
    y = jax.nn.sigmoid(y @ raw["se_fc2"].T)
    out = out * y[:, :, None]
    res = bn(conv1x1(x, raw["down_w"]), raw["down_bn"])
    return jax.nn.relu(out + res)


# ---------------------------------------------------------------------------
# Deterministic parameter initialization (PyTorch-default-style bounds).
# ---------------------------------------------------------------------------
def init_sern_params(key, cin, cout, reduction=16):
    red = max(cout // reduction, 1)
    ks = list(jax.random.split(key, 10))

    def u(k, shape, bound):
        return jax.random.uniform(k, shape, jnp.float32, -bound, bound)

    def bn(k, c):
        k1, k2, k3, k4 = jax.random.split(k, 4)
        return (jax.random.uniform(k1, (c,), jnp.float32, 0.8, 1.2),    # gamma
                jax.random.uniform(k2, (c,), jnp.float32, -0.1, 0.1),   # beta
                jax.random.uniform(k3, (c,), jnp.float32, -0.1, 0.1),   # running_mean
                jax.random.uniform(k4, (c,), jnp.float32, 0.8, 1.2))    # running_var

    b_in = 1.0 / math.sqrt(cin)
    b_out = 1.0 / math.sqrt(cout)
    return dict(
        conv1_w=u(ks[0], (cout, cin, 1), b_in), conv1_b=u(ks[1], (cout,), b_in),
        bn1=bn(ks[2], cout),
        conv2_w=u(ks[3], (cout, cout, 1), b_out), conv2_b=u(ks[4], (cout,), b_out),
        bn2=bn(ks[5], cout),
        se_fc1=u(ks[6], (red, cout), 1.0 / math.sqrt(cout)),
        se_fc2=u(ks[7], (cout, red), 1.0 / math.sqrt(red)),
        down_w=u(ks[8], (cout, cin, 1), b_in),
        down_bn=bn(ks[9], cout),
    )


if __name__ == "__main__":
    # SERN(input_size=128, output_size=32), batch=2, sequence length 64.
    B, CIN, COUT, T = 2, 128, 32, 64
    key = jax.random.PRNGKey(0)
    k_x, k_p = jax.random.split(key)
    raw = init_sern_params(k_p, CIN, COUT)
    x = jax.random.normal(k_x, (B, CIN, T), dtype=jnp.float32)

    params = prepare_sern_params(raw)          # one-time BN fold / transpose / bf16 cast
    fwd = jax.jit(sern_forward)
    out = jax.block_until_ready(fwd(x, params))

    assert out.shape == (B, COUT, T), out.shape
    assert bool(jnp.all(jnp.isfinite(out)))
    ref = sern_reference(x, raw)               # fp32 reference (bf16 MXU inputs => loose tol)
    max_err = float(jnp.max(jnp.abs(out - ref)))
    assert max_err < 5e-2, f"mismatch vs fp32 reference: {max_err}"
    print("KERNEL_OK")
</pallas_src>

<mosaic_0001>
module attributes {stable_mosaic.version = 11 : i64} {
  func.func @_sern_kernel(%arg0: i32, %arg1: memref<1x64x128xbf16, #tpu.memory_space<vmem>>, %arg2: memref<128x64xbf16, #tpu.memory_space<vmem>>, %arg3: memref<1x64xf32, #tpu.memory_space<vmem>>, %arg4: memref<32x32xbf16, #tpu.memory_space<vmem>>, %arg5: memref<1x32xf32, #tpu.memory_space<vmem>>, %arg6: memref<2x32xf32, #tpu.memory_space<vmem>>, %arg7: memref<2x32xf32, #tpu.memory_space<vmem>>, %arg8: memref<1x64x32xf32, #tpu.memory_space<vmem>>) attributes {dimension_semantics = [#tpu.dimension_semantics<parallel>], iteration_bounds = array<i64: 2>, scalar_prefetch = 0 : i64, scratch_operands = 0 : i64, tpu.core_type = #tpu.core_type<tc>, window_params = [{transform_indices = @transform_0, window_bounds = array<i64: 1, 64, 128>}, {pipeline_mode = #tpu.pipeline_mode<synchronous>, transform_indices = @transform_1, window_bounds = array<i64: 128, 64>}, {pipeline_mode = #tpu.pipeline_mode<synchronous>, transform_indices = @transform_2, window_bounds = array<i64: 1, 64>}, {pipeline_mode = #tpu.pipeline_mode<synchronous>, transform_indices = @transform_3, window_bounds = array<i64: 32, 32>}, {pipeline_mode = #tpu.pipeline_mode<synchronous>, transform_indices = @transform_4, window_bounds = array<i64: 1, 32>}, {pipeline_mode = #tpu.pipeline_mode<synchronous>, transform_indices = @transform_5, window_bounds = array<i64: 2, 32>}, {pipeline_mode = #tpu.pipeline_mode<synchronous>, transform_indices = @transform_6, window_bounds = array<i64: 2, 32>}, {transform_indices = @transform_7, window_bounds = array<i64: 1, 64, 32>}]} {
    %c0 = arith.constant 0 : index
    %c0_0 = arith.constant 0 : index
    %c0_1 = arith.constant 0 : index
    %0 = vector.load %arg1[%c0, %c0_0, %c0_1] : memref<1x64x128xbf16, #tpu.memory_space<vmem>>, vector<1x64x128xbf16>
    %1 = vector.shape_cast %0 : vector<1x64x128xbf16> to vector<64x128xbf16>
    %c0_2 = arith.constant 0 : index
    %c0_3 = arith.constant 0 : index
    %2 = vector.load %arg2[%c0_2, %c0_3] : memref<128x64xbf16, #tpu.memory_space<vmem>>, vector<128x64xbf16>
    %cst = arith.constant dense<0.000000e+00> : vector<64x64xf32>
    %3 = tpu.matmul %1, %2, %cst {dimension_numbers = #tpu.dot_dimension_numbers<[1], [0], [0], [1], [0, 0, 1, 1], [], []>} : vector<64x128xbf16>, vector<128x64xbf16>, vector<64x64xf32> -> vector<64x64xf32>
    %c0_4 = arith.constant 0 : index
    %c0_5 = arith.constant 0 : index
    %4 = vector.load %arg3[%c0_4, %c0_5] : memref<1x64xf32, #tpu.memory_space<vmem>>, vector<1x64xf32>
    %5 = vector.broadcast %4 : vector<1x64xf32> to vector<64x64xf32>
    %6 = arith.addf %3, %5 : vector<64x64xf32>
    %7 = vector.extract_strided_slice %6 {offsets = [0, 0], sizes = [64, 32], strides = [1, 1]} : vector<64x64xf32> to vector<64x32xf32>
    %cst_6 = arith.constant 0.000000e+00 : f32
    %8 = vector.broadcast %cst_6 : f32 to vector<64x32xf32>
    %9 = arith.maximumf %7, %8 : vector<64x32xf32>
    %10 = vector.extract_strided_slice %6 {offsets = [0, 32], sizes = [64, 32], strides = [1, 1]} : vector<64x64xf32> to vector<64x32xf32>
    %11 = arith.truncf %9 : vector<64x32xf32> to vector<64x32xbf16>
    %c0_7 = arith.constant 0 : index
    %c0_8 = arith.constant 0 : index
    %12 = vector.load %arg4[%c0_7, %c0_8] : memref<32x32xbf16, #tpu.memory_space<vmem>>, vector<32x32xbf16>
    %cst_9 = arith.constant dense<0.000000e+00> : vector<64x32xf32>
    %13 = tpu.matmul %11, %12, %cst_9 {dimension_numbers = #tpu.dot_dimension_numbers<[1], [0], [0], [1], [0, 0, 1, 1], [], []>} : vector<64x32xbf16>, vector<32x32xbf16>, vector<64x32xf32> -> vector<64x32xf32>
    %c0_10 = arith.constant 0 : index
    %c0_11 = arith.constant 0 : index
    %14 = vector.load %arg5[%c0_10, %c0_11] : memref<1x32xf32, #tpu.memory_space<vmem>>, vector<1x32xf32>
    %15 = vector.broadcast %14 : vector<1x32xf32> to vector<64x32xf32>
    %16 = arith.addf %13, %15 : vector<64x32xf32>
    %cst_12 = arith.constant dense<0.000000e+00> : vector<32xf32>
    %17 = vector.multi_reduction <add>, %16, %cst_12 [0] : vector<64x32xf32> to vector<32xf32>
    %18 = vector.shape_cast %17 : vector<32xf32> to vector<1x32xf32>
    %cst_13 = arith.constant 6.400000e+01 : f32
    %19 = vector.broadcast %cst_13 : f32 to vector<1x32xf32>
    %20 = arith.divf %18, %19 : vector<1x32xf32>
    %c0_14 = arith.constant 0 : index
    %c0_15 = arith.constant 0 : index
    %21 = vector.load %arg6[%c0_14, %c0_15] : memref<2x32xf32, #tpu.memory_space<vmem>>, vector<2x32xf32>
    %22 = vector.broadcast %20 : vector<1x32xf32> to vector<2x32xf32>
    %23 = arith.mulf %21, %22 : vector<2x32xf32>
    %cst_16 = arith.constant dense<0.000000e+00> : vector<2xf32>
    %24 = vector.multi_reduction <add>, %23, %cst_16 [1] : vector<2x32xf32> to vector<2xf32>
    %25 = vector.shape_cast %24 : vector<2xf32> to vector<2x1xf32>
    %cst_17 = arith.constant 0.000000e+00 : f32
    %26 = vector.broadcast %cst_17 : f32 to vector<2x1xf32>
    %27 = arith.maximumf %25, %26 : vector<2x1xf32>
    %c0_18 = arith.constant 0 : index
    %c0_19 = arith.constant 0 : index
    %28 = vector.load %arg7[%c0_18, %c0_19] : memref<2x32xf32, #tpu.memory_space<vmem>>, vector<2x32xf32>
    %29 = vector.broadcast %27 : vector<2x1xf32> to vector<2x32xf32>
    %30 = arith.mulf %28, %29 : vector<2x32xf32>
    %cst_20 = arith.constant dense<0.000000e+00> : vector<32xf32>
    %31 = vector.multi_reduction <add>, %30, %cst_20 [0] : vector<2x32xf32> to vector<32xf32>
    %32 = vector.shape_cast %31 : vector<32xf32> to vector<1x32xf32>
    %cst_21 = arith.constant 0.000000e+00 : f32
    %33 = vector.broadcast %cst_21 : f32 to vector<1x32xf32>
    %34 = arith.subf %33, %32 : vector<1x32xf32>
    %35 = math.exp %34 : vector<1x32xf32>
    %cst_22 = arith.constant 1.000000e+00 : f32
    %36 = vector.broadcast %cst_22 : f32 to vector<1x32xf32>
    %37 = arith.addf %36, %35 : vector<1x32xf32>
    %38 = tpu.reciprocal %37 {approx = true} : vector<1x32xf32> -> vector<1x32xf32>
    %39 = vector.broadcast %38 : vector<1x32xf32> to vector<64x32xf32>
    %40 = arith.mulf %16, %39 : vector<64x32xf32>
    %41 = arith.addf %40, %10 : vector<64x32xf32>
    %cst_23 = arith.constant 0.000000e+00 : f32
    %42 = vector.broadcast %cst_23 : f32 to vector<64x32xf32>
    %43 = arith.maximumf %41, %42 : vector<64x32xf32>
    %c0_24 = arith.constant 0 : index
    %c0_25 = arith.constant 0 : index
    %c0_26 = arith.constant 0 : index
    %44 = vector.load %arg8[%c0_24, %c0_25, %c0_26] : memref<1x64x32xf32, #tpu.memory_space<vmem>>, vector<1x64x32xf32>
    %45 = vector.shape_cast %44 : vector<1x64x32xf32> to vector<64x32xf32>
    %46 = vector.shape_cast %43 : vector<64x32xf32> to vector<1x64x32xf32>
    tpu.vector_store %arg8[%c0_24, %c0_25, %c0_26], %46 {strides = array<i32>} : memref<1x64x32xf32, #tpu.memory_space<vmem>>, vector<1x64x32xf32>,
    return
  }
  func.func @transform_0(%arg0: i32) -> (i32, i32, i32) {
    %c0_i32 = arith.constant 0 : i32
    %c0_i32_0 = arith.constant 0 : i32
    %c0_i32_1 = arith.constant 0 : i32
    return %arg0, %c0_i32, %c0_i32_0 : i32, i32, i32
  }
  func.func @transform_1(%arg0: i32) -> (i32, i32) {
    %c0_i32 = arith.constant 0 : i32
    %c0_i32_0 = arith.constant 0 : i32
    %c0_i32_1 = arith.constant 0 : i32
    return %c0_i32, %c0_i32_0 : i32, i32
  }
  func.func @transform_2(%arg0: i32) -> (i32, i32) {
    %c0_i32 = arith.constant 0 : i32
    %c0_i32_0 = arith.constant 0 : i32
    %c0_i32_1 = arith.constant 0 : i32
    return %c0_i32, %c0_i32_0 : i32, i32
  }
  func.func @transform_3(%arg0: i32) -> (i32, i32) {
    %c0_i32 = arith.constant 0 : i32
    %c0_i32_0 = arith.constant 0 : i32
    %c0_i32_1 = arith.constant 0 : i32
    return %c0_i32, %c0_i32_0 : i32, i32
  }
  func.func @transform_4(%arg0: i32) -> (i32, i32) {
    %c0_i32 = arith.constant 0 : i32
    %c0_i32_0 = arith.constant 0 : i32
    %c0_i32_1 = arith.constant 0 : i32
    return %c0_i32, %c0_i32_0 : i32, i32
  }
  func.func @transform_5(%arg0: i32) -> (i32, i32) {
    %c0_i32 = arith.constant 0 : i32
    %c0_i32_0 = arith.constant 0 : i32
    %c0_i32_1 = arith.constant 0 : i32
    return %c0_i32, %c0_i32_0 : i32, i32
  }
  func.func @transform_6(%arg0: i32) -> (i32, i32) {
    %c0_i32 = arith.constant 0 : i32
    %c0_i32_0 = arith.constant 0 : i32
    %c0_i32_1 = arith.constant 0 : i32
    return %c0_i32, %c0_i32_0 : i32, i32
  }
  func.func @transform_7(%arg0: i32) -> (i32, i32, i32) {
    %c0_i32 = arith.constant 0 : i32
    %c0_i32_0 = arith.constant 0 : i32
    %c0_i32_1 = arith.constant 0 : i32
    return %arg0, %c0_i32, %c0_i32_0 : i32, i32, i32
  }
}

</mosaic_0001>

<llo_original>
// kernel: sern_forward.1
$region0: #{sern_forward.1}
  #allocation0 [shape = 'u32[]', space=smem, size = 0x4, offset = 0x4, fixed_abs, tag = 'smem constant byte address 0x4 - core index']
  #allocation1 [shape = 'u32[144,128]{1,0:T(1,128)}', space=vmem, size = 0x12000, scoped, tag = 'internal scratch']
  %s0 = inlined_call_operand.vmem [shape: bf16[2,64,128], index: 0, kind: input, shape index: {}]
  %s1 = inlined_call_operand.vmem [shape: bf16[128,64], index: 1, kind: input, shape index: {}]
  %s2 = inlined_call_operand.vmem [shape: f32[1,64], index: 2, kind: input, shape index: {}]
  %s3 = inlined_call_operand.vmem [shape: bf16[32,32], index: 3, kind: input, shape index: {}]
  %s4 = inlined_call_operand.vmem [shape: f32[1,32], index: 4, kind: input, shape index: {}]
  %s5 = inlined_call_operand.vmem [shape: f32[2,32], index: 5, kind: input, shape index: {}]
  %s6 = inlined_call_operand.vmem [shape: f32[2,32], index: 6, kind: input, shape index: {}]
  %s7 = inlined_call_operand.vmem [shape: f32[2,64,32], index: 7, kind: output, shape index: {}]
  %s8 = sld [smem:[#allocation0]]
  $region61: #{sern_forward.1} parent=0
    _
  %s10 = ssub.s32 1, %s8
  %s11 = scalar_select 0, %s10, %s8
  loop: start=0, step=1, limit=4
  $region2: #{sern_forward.1} parent=0 // loop_pre_header
    _
  $region3: #{sern_forward.1} parent=0 // loop_header
    %s13 = sphi 0, %s17
    %p14 = scmp.ge.s32.totalorder %s13, 4
    %s23 = sphi 0, %s25
    %s26 = sphi 0, %s23
    %s27 = sphi 0, %s26
    %s43 = sphi 0, %s27
    %s47 = sphi 0, %s47
    %s49 = sphi 0, %s47
    %s50 = sphi 0, %s49
    %s64 = sphi 0, %s50
    %s68 = sphi 0, %s68
    %s70 = sphi 0, %s68
    %s71 = sphi 0, %s70
    %s85 = sphi 0, %s71
    %s89 = sphi 0, %s89
    %s91 = sphi 0, %s89
    %s92 = sphi 0, %s91
    %s106 = sphi 0, %s92
    %s110 = sphi 0, %s110
    %s112 = sphi 0, %s110
    %s113 = sphi 0, %s112
    %s127 = sphi 0, %s113
    %s131 = sphi 0, %s131
    %s133 = sphi 0, %s131
    %s134 = sphi 0, %s133
    %s148 = sphi 0, %s134
    %s152 = sphi 0, %s152
    %s154 = sphi 0, %s152
    %s155 = sphi 0, %s154
    %s169 = sphi 0, %s155
    %s175 = sphi 0, %s177
    %s178 = sphi 0, %s175
    %s179 = sphi 0, %s178
    %s195 = sphi 0, %s179
  $region4: #{sern_forward.1} parent=0 // loop_header_branch
    %16 = sbr.rel (%p14) target = $region8
  $region5: #{sern_forward.1} parent=0 // loop_body
    %s18 = ssub.s32 %s13, 1
    %s19 = ssub.s32 %s13, 2
    %s20 = sadd.s32 %s13, 1
    %s21 = ssub.s32 %s13, %s20
    %p22 = scmp.eq.s32.totalorder %s21, 0
    %s24 = sadd.s32 %s23, 1
    %s25 = scalar_select %p22, %s23, %s24
    %p28 = pneg %p22
    %p29 = scmp.eq.s32.totalorder %s13, 1
    %p30 = por %p28, %p29
    %p31 = scmp.ne.s32.totalorder %s23, %s26
    %p32 = scmp.eq.s32.totalorder %s13, 0
    %p33 = por %p31, %p32
    %p34 = scmp.ne.s32.totalorder %s23, %s26
    %p35 = scmp.eq.s32.totalorder %s18, 1
    %p36 = por %p34, %p35
    %p37 = scmp.ne.s32.totalorder %s26, %s27
    %p38 = scmp.eq.s32.totalorder %s18, 0
    %p39 = por %p37, %p38
    %p40 = scmp.ne.s32.totalorder %s26, %s27
    %p41 = scmp.eq.s32.totalorder %s19, 1
    %p42 = por %p40, %p41
    %p44 = scmp.ne.s32.totalorder %s27, %s43
    %p45 = scmp.eq.s32.totalorder %s19, 0
    %p46 = por %p44, %p45
    %s48 = sadd.s32 %s47, 1
    %p51 = scmp.eq.s32.totalorder %s13, 1
    %p52 = scmp.ne.s32.totalorder %s47, %s49
    %p53 = scmp.eq.s32.totalorder %s13, 0
    %p54 = por %p52, %p53
    %p55 = scmp.ne.s32.totalorder %s47, %s49
    %p56 = scmp.eq.s32.totalorder %s18, 1
    %p57 = por %p55, %p56
    %p58 = scmp.ne.s32.totalorder %s49, %s50
    %p59 = scmp.eq.s32.totalorder %s18, 0
    %p60 = por %p58, %p59
    %p61 = scmp.ne.s32.totalorder %s49, %s50
    %p62 = scmp.eq.s32.totalorder %s19, 1
    %p63 = por %p61, %p62
    %p65 = scmp.ne.s32.totalorder %s50, %s64
    %p66 = scmp.eq.s32.totalorder %s19, 0
    %p67 = por %p65, %p66
    %s69 = sadd.s32 %s68, 1
    %p72 = scmp.eq.s32.totalorder %s13, 1
    %p73 = scmp.ne.s32.totalorder %s68, %s70
    %p74 = scmp.eq.s32.totalorder %s13, 0
    %p75 = por %p73, %p74
    %p76 = scmp.ne.s32.totalorder %s68, %s70
    %p77 = scmp.eq.s32.totalorder %s18, 1
    %p78 = por %p76, %p77
    %p79 = scmp.ne.s32.totalorder %s70, %s71
    %p80 = scmp.eq.s32.totalorder %s18, 0
    %p81 = por %p79, %p80
    %p82 = scmp.ne.s32.totalorder %s70, %s71
    %p83 = scmp.eq.s32.totalorder %s19, 1
    %p84 = por %p82, %p83
    %p86 = scmp.ne.s32.totalorder %s71, %s85
    %p87 = scmp.eq.s32.totalorder %s19, 0
    %p88 = por %p86, %p87
    %s90 = sadd.s32 %s89, 1
    %p93 = scmp.eq.s32.totalorder %s13, 1
    %p94 = scmp.ne.s32.totalorder %s89, %s91
    %p95 = scmp.eq.s32.totalorder %s13, 0
    %p96 = por %p94, %p95
    %p97 = scmp.ne.s32.totalorder %s89, %s91
    %p98 = scmp.eq.s32.totalorder %s18, 1
    %p99 = por %p97, %p98
    %p100 = scmp.ne.s32.totalorder %s91, %s92
    %p101 = scmp.eq.s32.totalorder %s18, 0
    %p102 = por %p100, %p101
    %p103 = scmp.ne.s32.totalorder %s91, %s92
    %p104 = scmp.eq.s32.totalorder %s19, 1
    %p105 = por %p103, %p104
    %p107 = scmp.ne.s32.totalorder %s92, %s106
    %p108 = scmp.eq.s32.totalorder %s19, 0
    %p109 = por %p107, %p108
    %s111 = sadd.s32 %s110, 1
    %p114 = scmp.eq.s32.totalorder %s13, 1
    %p115 = scmp.ne.s32.totalorder %s110, %s112
    %p116 = scmp.eq.s32.totalorder %s13, 0
    %p117 = por %p115, %p116
    %p118 = scmp.ne.s32.totalorder %s110, %s112
    %p119 = scmp.eq.s32.totalorder %s18, 1
    %p120 = por %p118, %p119
    %p121 = scmp.ne.s32.totalorder %s112, %s113
    %p122 = scmp.eq.s32.totalorder %s18, 0
    %p123 = por %p121, %p122
    %p124 = scmp.ne.s32.totalorder %s112, %s113
    %p125 = scmp.eq.s32.totalorder %s19, 1
    %p126 = por %p124, %p125
    %p128 = scmp.ne.s32.totalorder %s113, %s127
    %p129 = scmp.eq.s32.totalorder %s19, 0
    %p130 = por %p128, %p129
    %s132 = sadd.s32 %s131, 1
    %p135 = scmp.eq.s32.totalorder %s13, 1
    %p136 = scmp.ne.s32.totalorder %s131, %s133
    %p137 = scmp.eq.s32.totalorder %s13, 0
    %p138 = por %p136, %p137
    %p139 = scmp.ne.s32.totalorder %s131, %s133
    %p140 = scmp.eq.s32.totalorder %s18, 1
    %p141 = por %p139, %p140
    %p142 = scmp.ne.s32.totalorder %s133, %s134
    %p143 = scmp.eq.s32.totalorder %s18, 0
    %p144 = por %p142, %p143
    %p145 = scmp.ne.s32.totalorder %s133, %s134
    %p146 = scmp.eq.s32.totalorder %s19, 1
    %p147 = por %p145, %p146
    %p149 = scmp.ne.s32.totalorder %s134, %s148
    %p150 = scmp.eq.s32.totalorder %s19, 0
    %p151 = por %p149, %p150
    %s153 = sadd.s32 %s152, 1
    %p156 = scmp.eq.s32.totalorder %s13, 1
    %p157 = scmp.ne.s32.totalorder %s152, %s154
    %p158 = scmp.eq.s32.totalorder %s13, 0
    %p159 = por %p157, %p158
    %p160 = scmp.ne.s32.totalorder %s152, %s154
    %p161 = scmp.eq.s32.totalorder %s18, 1
    %p162 = por %p160, %p161
    %p163 = scmp.ne.s32.totalorder %s154, %s155
    %p164 = scmp.eq.s32.totalorder %s18, 0
    %p165 = por %p163, %p164
    %p166 = scmp.ne.s32.totalorder %s154, %s155
    %p167 = scmp.eq.s32.totalorder %s19, 1
    %p168 = por %p166, %p167
    %p170 = scmp.ne.s32.totalorder %s155, %s169
    %p171 = scmp.eq.s32.totalorder %s19, 0
    %p172 = por %p170, %p171
    %s173 = ssub.s32 %s13, %s20
    %p174 = scmp.eq.s32.totalorder %s173, 0
    %s176 = sadd.s32 %s175, 1
    %s177 = scalar_select %p174, %s175, %s176
    %p180 = pneg %p174
    %p181 = scmp.eq.s32.totalorder %s13, 1
    %p182 = por %p180, %p181
    %p183 = scmp.ne.s32.totalorder %s175, %s178
    %p184 = scmp.eq.s32.totalorder %s13, 0
    %p185 = por %p183, %p184
    %p186 = scmp.ne.s32.totalorder %s175, %s178
    %p187 = scmp.eq.s32.totalorder %s18, 1
    %p188 = por %p186, %p187
    %p189 = scmp.ne.s32.totalorder %s178, %s179
    %p190 = scmp.eq.s32.totalorder %s18, 0
    %p191 = por %p189, %p190
    %p192 = scmp.ne.s32.totalorder %s178, %s179
    %p193 = scmp.eq.s32.totalorder %s19, 1
    %p194 = por %p192, %p193
    %p196 = scmp.ne.s32.totalorder %s179, %s195
    %p197 = scmp.eq.s32.totalorder %s19, 0
    %p198 = por %p196, %p197
    %p199 = scmp.le.s32.totalorder 1, %s13
    %p200 = scmp.lt.s32.totalorder %s13, 3
    %p201 = pnand %p199, %p200
    %p202 = pneg %p201
    // Predicated region
    $region9: #{sern_forward.1} parent=5 // pred_check
      _
    $region10: #{sern_forward.1} parent=5 // pred_check_branch
      %204 = sbr.rel (%p201) target = $region12
    $region11: #{sern_forward.1} parent=5 // pred_region
      %s205 = ssub.s32 %s13, 1
      // Predicated region
      $region13: #{sern_forward.1} parent=11 // pred_check
        %p206 = pneg %p60
      $region14: #{sern_forward.1} parent=11 // pred_check_branch
        %208 = sbr.rel (%p206) target = $region16
      $region15: #{sern_forward.1} parent=11 // pred_region
        _
      $region16: #{sern_forward.1} parent=11 // pred_fallthru
        _
      // Predicated region
      $region17: #{sern_forward.1} parent=11 // pred_check
        %p209 = pneg %p81
      $region18: #{sern_forward.1} parent=11 // pred_check_branch
        %211 = sbr.rel (%p209) target = $region20
      $region19: #{sern_forward.1} parent=11 // pred_region
        _
      $region20: #{sern_forward.1} parent=11 // pred_fallthru
        _
      // Predicated region
      $region21: #{sern_forward.1} parent=11 // pred_check
        %p212 = pneg %p102
      $region22: #{sern_forward.1} parent=11 // pred_check_branch
        %214 = sbr.rel (%p212) target = $region24
      $region23: #{sern_forward.1} parent=11 // pred_region
        _
      $region24: #{sern_forward.1} parent=11 // pred_fallthru
        _
      // Predicated region
      $region25: #{sern_forward.1} parent=11 // pred_check
        %p215 = pneg %p123
      $region26: #{sern_forward.1} parent=11 // pred_check_branch
        %217 = sbr.rel (%p215) target = $region28
      $region27: #{sern_forward.1} parent=11 // pred_region
        _
      $region28: #{sern_forward.1} parent=11 // pred_fallthru
        _
      // Predicated region
      $region29: #{sern_forward.1} parent=11 // pred_check
        %p218 = pneg %p144
      $region30: #{sern_forward.1} parent=11 // pred_check_branch
        %220 = sbr.rel (%p218) target = $region32
      $region31: #{sern_forward.1} parent=11 // pred_region
        _
      $region32: #{sern_forward.1} parent=11 // pred_fallthru
        _
      // Predicated region
      $region33: #{sern_forward.1} parent=11 // pred_check
        %p221 = pneg %p165
      $region34: #{sern_forward.1} parent=11 // pred_check_branch
        %223 = sbr.rel (%p221) target = $region36
      $region35: #{sern_forward.1} parent=11 // pred_region
        _
      $region36: #{sern_forward.1} parent=11 // pred_fallthru
        _
    $region12: #{sern_forward.1} parent=5 // pred_fallthru
      _
    %p224 = scmp.lt.s32.totalorder %s13, 2
    // Predicated region
    $region37: #{sern_forward.1} parent=5 // pred_check
      %p225 = pneg %p224
    $region38: #{sern_forward.1} parent=5 // pred_check_branch
      %227 = sbr.rel (%p225) target = $region40
    $region39: #{sern_forward.1} parent=5 // pred_region
      // Predicated region
      $region41: #{sern_forward.1} parent=39 // pred_check
        %p228 = pneg %p33
      $region42: #{sern_forward.1} parent=39 // pred_check_branch
        %230 = sbr.rel (%p228) target = $region44
      $region43: #{sern_forward.1} parent=39 // pred_region
        %p231 = scmp.lt.s32.totalorder %s13, 1
        %s232 = scalar_select %p231, %s13, 1
        %s233 = smul.addr %s232, 8
        %s234 = smul.addr %s233, 4
        %s235 = scalar_lea.vmem %s0, %s234
      $region44: #{sern_forward.1} parent=39 // pred_fallthru
        _
    $region40: #{sern_forward.1} parent=5 // pred_fallthru
      _
    %p236 = scmp.le.s32.totalorder 1, %s13
    %p237 = scmp.lt.s32.totalorder %s13, 3
    %p238 = pnand %p236, %p237
    %p239 = pneg %p238
    // Predicated region
    $region45: #{sern_forward.1} parent=5 // pred_check
      _
    $region46: #{sern_forward.1} parent=5 // pred_check_branch
      %241 = sbr.rel (%p238) target = $region48
    $region47: #{sern_forward.1} parent=5 // pred_region
      %s242 = ssub.s32 %s13, 1
      %p243 = scmp.lt.s32.totalorder %s18, 1
      %s244 = scalar_select %p243, %s18, 1
      %s245 = smul.addr %s244, 8
      %s246 = smul.addr %s245, 4
      %s247 = scalar_lea.vmem %s0, %s246
      %p248 = pneg %p39
      %p249 = pneg %p36
      %p250 = pneg %p60
      %p251 = pneg %p57
      %p252 = pneg %p81
      %p253 = pneg %p78
      %p254 = pneg %p102
      %p255 = pneg %p99
      %p256 = pneg %p123
      %p257 = pneg %p120
      %p258 = pneg %p144
      %p259 = pneg %p141
      %p260 = pneg %p165
      %p261 = pneg %p162
      %p262 = pneg %p191
      %p263 = pneg %p188
      %p264 = scmp.lt.s32.totalorder %s18, 1
      %s265 = scalar_select %p264, %s18, 1
      %s266 = smul.addr %s265, 8
      %s267 = smul.addr %s266, 8
      %s268 = scalar_lea.vmem %s7, %s267
      %p269 = scmp.lt.s32.totalorder %s18, 1
      %s270 = scalar_select %p269, %s18, 1
      %s271 = smul.addr %s270, 8
      %s272 = smul.addr %s271, 4
      %s273 = scalar_lea.vmem %s0, %s272
      %p274 = scmp.lt.s32.totalorder %s18, 1
      %s275 = scalar_select %p274, %s18, 1
      %s276 = smul.addr %s275, 8
      %s277 = smul.addr %s276, 8
      %s278 = scalar_lea.vmem %s7, %s277
      %v280 = vld [vmem:[%s273] sm:$0xf]
      %v281 = vld [vmem:[%s273 + $0x4] sm:$0xf]
      %v282 = vld [vmem:[%s273 + $0x8] sm:$0xf]
      %v283 = vld [vmem:[%s273 + $0xc] sm:$0xf]
      %v284 = vld [vmem:[%s273 + $0x10] sm:$0xf]
      %v285 = vld [vmem:[%s273 + $0x14] sm:$0xf]
      %v286 = vld [vmem:[%s273 + $0x18] sm:$0xf]
      %v287 = vld [vmem:[%s273 + $0x1c] sm:$0xf]
      %v288 = vld [vmem:[%s1] sm:$0xf]
      %v289 = vld [vmem:[%s1 + $0x4] sm:$0xf]
      %v290 = vld [vmem:[%s1 + $0x8] sm:$0xf]
      %v291 = vld [vmem:[%s1 + $0xc] sm:$0xf]
      %v292 = vld [vmem:[%s1 + $0x10] sm:$0xf]
      %v293 = vld [vmem:[%s1 + $0x14] sm:$0xf]
      %v294 = vld [vmem:[%s1 + $0x18] sm:$0xf]
      %v295 = vld [vmem:[%s1 + $0x1c] sm:$0xf]
      %v296 = vld [vmem:[%s1 + $0x20] sm:$0xf]
      %v297 = vld [vmem:[%s1 + $0x24] sm:$0xf]
      %v298 = vld [vmem:[%s1 + $0x28] sm:$0xf]
      %v299 = vld [vmem:[%s1 + $0x2c] sm:$0xf]
      %v300 = vld [vmem:[%s1 + $0x30] sm:$0xf]
      %v301 = vld [vmem:[%s1 + $0x34] sm:$0xf]
      %v302 = vld [vmem:[%s1 + $0x38] sm:$0xf]
      %v303 = vld [vmem:[%s1 + $0x3c] sm:$0xf]
      %v304 = vld [vmem:[%s2] sm:$0x1]
      %v306 = vlaneseq
      %v307 = vshrl.u32 %v306, 7
      %v308 = vsub.s32 0, %v307
      %v309 = vrot.slane %v304, %v308
      %v319 = vunpack.c.l.b16 %v280
      %v320 = vunpack.c.l.b16 %v281
      %v321 = vunpack.c.l.b16 %v282
      %v322 = vunpack.c.l.b16 %v283
      %v323 = vunpack.c.l.b16 %v284
      %v324 = vunpack.c.l.b16 %v285
      %v325 = vunpack.c.l.b16 %v286
      %v326 = vunpack.c.l.b16 %v287
      %v327 = vpack.c.b16 %v320, %v319
      %v328 = vpack.c.b16 %v322, %v321
      %v329 = vpack.c.b16 %v324, %v323
      %v330 = vpack.c.b16 %v326, %v325
      %v351 = vunpack.c.l.b16 %v288
      %v352 = vunpack.c.l.b16 %v289
      %v353 = vunpack.c.l.b16 %v290
      %v354 = vunpack.c.l.b16 %v291
      %v355 = vunpack.c.l.b16 %v292
      %v356 = vunpack.c.l.b16 %v293
      %v357 = vunpack.c.l.b16 %v294
      %v358 = vunpack.c.l.b16 %v295
      %v359 = vunpack.c.l.b16 %v296
      %v360 = vunpack.c.l.b16 %v297
      %v361 = vunpack.c.l.b16 %v298
      %v362 = vunpack.c.l.b16 %v299
      %v363 = vunpack.c.l.b16 %v300
      %v364 = vunpack.c.l.b16 %v301
      %v365 = vunpack.c.l.b16 %v302
      %v366 = vunpack.c.l.b16 %v303
      %v367 = vpack.c.b16 %v352, %v351
      %v368 = vpack.c.b16 %v354, %v353
      %v369 = vpack.c.b16 %v356, %v355
      %v370 = vpack.c.b16 %v358, %v357
      %v371 = vpack.c.b16 %v360, %v359
      %v372 = vpack.c.b16 %v362, %v361
      %v373 = vpack.c.b16 %v364, %v363
      %v374 = vpack.c.b16 %v366, %v365
      %383 = vmatprep.subr.bf16.mxu0 0
      %384 = vmatpush1.bf16.msra.mxu0 %v367
      %385 = vmatprep.subr.bf16.mxu0 0
      %386 = vmatpush1.bf16.msra.mxu0 %v368
      %387 = vmatprep.subr.bf16.mxu0 0
      %388 = vmatpush1.bf16.msra.mxu0 %v369
      %389 = vmatprep.subr.bf16.mxu0 0
      %390 = vmatpush1.bf16.msra.mxu0 %v370
      %391 = vmatprep.subr.bf16.mxu0 0
      %392 = vmatpush1.bf16.msra.mxu0 %v371
      %393 = vmatprep.subr.bf16.mxu0 0
      %394 = vmatpush1.bf16.msra.mxu0 %v372
      %395 = vmatprep.subr.bf16.mxu0 0
      %396 = vmatpush1.bf16.msra.mxu0 %v373
      %397 = vmatprep.subr.bf16.mxu0 0
      %398 = vmatpush1.bf16.msra.mxu0 %v374
      %399 = vmatprep.subr.bf16.mxu0 0
      %400 = vmatpush1.bf16.msra.mxu0 0
      %401 = vmatprep.subr.bf16.mxu0 0
      %402 = vmatpush1.bf16.msra.mxu0 0
      %403 = vmatprep.subr.bf16.mxu0 0
      %404 = vmatpush1.bf16.msra.mxu0 0
      %405 = vmatprep.subr.bf16.mxu0 0
      %406 = vmatpush1.bf16.msra.mxu0 0
      %407 = vmatprep.subr.bf16.mxu0 0
      %408 = vmatpush1.bf16.msra.mxu0 0
      %409 = vmatprep.subr.bf16.mxu0 0
      %410 = vmatpush1.bf16.msra.mxu0 0
      %411 = vmatprep.subr.bf16.mxu0 0
      %412 = vmatpush1.bf16.msra.mxu0 0
      %413 = vmatprep.subr.bf16.mxu0 0
      %414 = vmatpush1.bf16.msra.mxu0 0
      %415 = vmatprep.mubr.bf16.mxu0 0
      %416 = vmatmul.mubr.bf16.gmra.mrb[0].mxu0 %v327
      %v417 = vpop.f32.mrb[0].mxu0
      %v418 = vadd.f32 %v309, %v417
      %v419 = vpop.f32.mrb[0].mxu0
      %v420 = vpop.f32.mrb[0].mxu0
      %v421 = vadd.f32 %v309, %v420
      %v422 = vpop.f32.mrb[0].mxu0
      %423 = vmatprep.mubr.bf16.mxu0 0
      %424 = vmatmul.mubr.bf16.gmra.mrb[0].mxu0 %v328
      %v425 = vpop.f32.mrb[0].mxu0
      %v426 = vadd.f32 %v309, %v425
      %v427 = vpop.f32.mrb[0].mxu0
      %v428 = vpop.f32.mrb[0].mxu0
      %v429 = vadd.f32 %v309, %v428
      %v430 = vpop.f32.mrb[0].mxu0
      %431 = vmatprep.mubr.bf16.mxu0 0
      %432 = vmatmul.mubr.bf16.gmra.mrb[0].mxu0 %v329
      %v433 = vpop.f32.mrb[0].mxu0
      %v434 = vadd.f32 %v309, %v433
      %v435 = vpop.f32.mrb[0].mxu0
      %v436 = vpop.f32.mrb[0].mxu0
      %v437 = vadd.f32 %v309, %v436
      %v438 = vpop.f32.mrb[0].mxu0
      %439 = vmatprep.mubr.bf16.mxu0 0
      %440 = vmatmul.mubr.bf16.gmra.mrb[0].mxu0 %v330
      %v441 = vpop.f32.mrb[0].mxu0
      %v442 = vadd.f32 %v309, %v441
      %v443 = vpop.f32.mrb[0].mxu0
      %v444 = vpop.f32.mrb[0].mxu0
      %v445 = vadd.f32 %v309, %v444
      %v446 = vpop.f32.mrb[0].mxu0
      %447 = vdwg.mxu0
      %v448 = vmax.f32 %v418, 0.0
      %v449 = vmax.f32 %v421, 0.0
      %v450 = vmax.f32 %v426, 0.0
      %v451 = vmax.f32 %v429, 0.0
      %v452 = vmax.f32 %v434, 0.0
      %v453 = vmax.f32 %v437, 0.0
      %v454 = vmax.f32 %v442, 0.0
      %v455 = vmax.f32 %v445, 0.0
      %v456 = vpack.c.bf16 %v449, %v448
      %v457 = vpack.c.bf16 %v451, %v450
      %v458 = vpack.c.bf16 %v453, %v452
      %v459 = vpack.c.bf16 %v455, %v454
      %v460 = vld [vmem:[%s3] sm:$0xf]
      %v461 = vld [vmem:[%s3 + $0x4] sm:$0xf]
      %v462 = vld [vmem:[%s3 + $0x8] sm:$0xf]
      %v463 = vld [vmem:[%s3 + $0xc] sm:$0xf]
      %v464 = vld [vmem:[%s4] sm:$0x1]
      %v466 = vlaneseq
      %v467 = vshrl.u32 %v466, 7
      %v468 = vsub.s32 0, %v467
      %v469 = vrot.slane %v464, %v468
      %v475 = vunpack.c.l.b16 %v460
      %v476 = vunpack.c.l.b16 %v461
      %v477 = vunpack.c.l.b16 %v462
      %v478 = vunpack.c.l.b16 %v463
      %v479 = vpack.c.b16 %v476, %v475
      %v480 = vpack.c.b16 %v478, %v477
      %vm483 = vcmask 261120
      %v485 = vsel %vm483, %v456, 0
      %v488 = vsel %vm483, %v457, 0
      %v491 = vsel %vm483, %v458, 0
      %v494 = vsel %vm483, %v459, 0
      %496 = vmatprep.subr.bf16.mxu0 0
      %497 = vmatpush1.bf16.msra.mxu0 %v479
      %498 = vmatprep.subr.bf16.mxu0 0
      %499 = vmatpush1.bf16.msra.mxu0 %v480
      %500 = vmatprep.subr.bf16.mxu0 0
      %501 = vmatpush1.bf16.msra.mxu0 0
      %502 = vmatprep.subr.bf16.mxu0 0
      %503 = vmatpush1.bf16.msra.mxu0 0
      %504 = vmatprep.subr.bf16.mxu0 0
      %505 = vmatpush1.bf16.msra.mxu0 0
      %506 = vmatprep.subr.bf16.mxu0 0
      %507 = vmatpush1.bf16.msra.mxu0 0
      %508 = vmatprep.subr.bf16.mxu0 0
      %509 = vmatpush1.bf16.msra.mxu0 0
      %510 = vmatprep.subr.bf16.mxu0 0
      %511 = vmatpush1.bf16.msra.mxu0 0
      %512 = vmatprep.subr.bf16.mxu0 0
      %513 = vmatpush1.bf16.msra.mxu0 0
      %514 = vmatprep.subr.bf16.mxu0 0
      %515 = vmatpush1.bf16.msra.mxu0 0
      %516 = vmatprep.subr.bf16.mxu0 0
      %517 = vmatpush1.bf16.msra.mxu0 0
      %518 = vmatprep.subr.bf16.mxu0 0
      %519 = vmatpush1.bf16.msra.mxu0 0
      %520 = vmatprep.subr.bf16.mxu0 0
      %521 = vmatpush1.bf16.msra.mxu0 0
      %522 = vmatprep.subr.bf16.mxu0 0
      %523 = vmatpush1.bf16.msra.mxu0 0
      %524 = vmatprep.subr.bf16.mxu0 0
      %525 = vmatpush1.bf16.msra.mxu0 0
      %526 = vmatprep.subr.bf16.mxu0 0
      %527 = vmatpush1.bf16.msra.mxu0 0
      %528 = vmatprep.mubr.bf16.mxu0 0
      %529 = vmatmul.mubr.bf16.gmra.mrb[0].mxu0 %v485
      %v530 = vpop.f32.mrb[0].mxu0
      %v531 = vadd.f32 %v469, %v530
      %v532 = vpop.f32.mrb[0].mxu0
      %v533 = vpop.f32.mrb[0].mxu0
      %v534 = vadd.f32 %v469, %v533
      %v535 = vpop.f32.mrb[0].mxu0
      %536 = vmatprep.mubr.bf16.mxu0 0
      %537 = vmatmul.mubr.bf16.gmra.mrb[0].mxu0 %v488
      %v538 = vpop.f32.mrb[0].mxu0
      %v539 = vadd.f32 %v469, %v538
      %v540 = vpop.f32.mrb[0].mxu0
      %v541 = vpop.f32.mrb[0].mxu0
      %v542 = vadd.f32 %v469, %v541
      %v543 = vpop.f32.mrb[0].mxu0
      %544 = vmatprep.mubr.bf16.mxu0 0
      %545 = vmatmul.mubr.bf16.gmra.mrb[0].mxu0 %v491
      %v546 = vpop.f32.mrb[0].mxu0
      %v547 = vadd.f32 %v469, %v546
      %v548 = vpop.f32.mrb[0].mxu0
      %v549 = vpop.f32.mrb[0].mxu0
      %v550 = vadd.f32 %v469, %v549
      %v551 = vpop.f32.mrb[0].mxu0
      %552 = vmatprep.mubr.bf16.mxu0 0
      %553 = vmatmul.mubr.bf16.gmra.mrb[0].mxu0 %v494
      %v554 = vpop.f32.mrb[0].mxu0
      %v555 = vadd.f32 %v469, %v554
      %v556 = vpop.f32.mrb[0].mxu0
      %v557 = vpop.f32.mrb[0].mxu0
      %v558 = vadd.f32 %v469, %v557
      %v559 = vpop.f32.mrb[0].mxu0
      %560 = vdwg.mxu0
      %v561 = vsel %vm483, %v531, 0.0
      %v562 = vsel %vm483, %v534, 0.0
      %v563 = vadd.f32 %v561, %v562
      %v564 = vsel %vm483, %v539, 0.0
      %v565 = vadd.f32 %v563, %v564
      %v566 = vsel %vm483, %v542, 0.0
      %v567 = vadd.f32 %v565, %v566
      %v568 = vsel %vm483, %v547, 0.0
      %v569 = vadd.f32 %v567, %v568
      %v570 = vsel %vm483, %v550, 0.0
      %v571 = vadd.f32 %v569, %v570
      %v572 = vsel %vm483, %v555, 0.0
      %v573 = vadd.f32 %v571, %v572
      %v574 = vsel %vm483, %v558, 0.0
      %v575 = vadd.f32 %v573, %v574
      %v576 = vrot.slane %v575, 4
      %v577 = vadd.f32 %v575, %v576
      %v578 = vrot.slane %v577, 2
      %v579 = vadd.f32 %v577, %v578
      %v580 = vrot.slane %v579, 1
      %v581 = vadd.f32 %v579, %v580
      %v582 = vrcp.pop 64.0
      %v583 = vmul.f32 %v581, %v582
      %v584 = vld [vmem:[%s5] sm:$0x3]
      %v585 = vmul.f32 %v584, %v583
      %vm586 = vcmask 254976
      %v587 = vsel %vm586, %v585, 0.0
      %588 = vadd.xlane.f32.xlu0 %v587
      %v589 = vpop.xlane.xlu0 %588
      %v590 = vmax.f32 %v589, 0.0
      %v591 = vld [vmem:[%s6] sm:$0x3]
      %v592 = vmul.f32 %v591, %v590
      %v593 = vsel %vm586, %v592, 0.0
      %v594 = vrot.slane %v593, 4
      %v595 = vadd.f32 %v593, %v594
      %v596 = vrot.slane %v595, 2
      %v597 = vadd.f32 %v595, %v596
      %v598 = vrot.slane %v597, 1
      %v599 = vadd.f32 %v597, %v598
      %v600 = vsub.f32 0.0, %v599
      %v601 = vmul.f32 %v600, 1.442695
      %v602 = vpow.pop %v601
      %v603 = vadd.f32 %v602, 1.0
      %v604 = vrcp.pop %v603
      %v605 = vmul.f32 %v531, %v604
      %v606 = vmul.f32 %v534, %v604
      %v607 = vmul.f32 %v539, %v604
      %v608 = vmul.f32 %v542, %v604
      %v609 = vmul.f32 %v547, %v604
      %v610 = vmul.f32 %v550, %v604
      %v611 = vmul.f32 %v555, %v604
      %v612 = vmul.f32 %v558, %v604
      %621 = vrot.lane.b32.xlu0 %v418, 96
      %v622 = vpop.permute.xlu0 %621
      %623 = vrot.lane.b32.xlu0 %v421, 96
      %v624 = vpop.permute.xlu0 %623
      %625 = vrot.lane.b32.xlu0 %v426, 96
      %v626 = vpop.permute.xlu0 %625
      %627 = vrot.lane.b32.xlu0 %v429, 96
      %v628 = vpop.permute.xlu0 %627
      %629 = vrot.lane.b32.xlu0 %v434, 96
      %v630 = vpop.permute.xlu0 %629
      %631 = vrot.lane.b32.xlu0 %v437, 96
      %v632 = vpop.permute.xlu0 %631
      %633 = vrot.lane.b32.xlu0 %v442, 96
      %v634 = vpop.permute.xlu0 %633
      %635 = vrot.lane.b32.xlu0 %v445, 96
      %v636 = vpop.permute.xlu0 %635
      %v645 = vadd.f32 %v605, %v622
      %v646 = vadd.f32 %v606, %v624
      %v647 = vadd.f32 %v607, %v626
      %v648 = vadd.f32 %v608, %v628
      %v649 = vadd.f32 %v609, %v630
      %v650 = vadd.f32 %v610, %v632
      %v651 = vadd.f32 %v611, %v634
      %v652 = vadd.f32 %v612, %v636
      %v653 = vmax.f32 %v645, 0.0
      %v654 = vmax.f32 %v646, 0.0
      %v655 = vmax.f32 %v647, 0.0
      %v656 = vmax.f32 %v648, 0.0
      %v657 = vmax.f32 %v649, 0.0
      %v658 = vmax.f32 %v650, 0.0
      %v659 = vmax.f32 %v651, 0.0
      %v660 = vmax.f32 %v652, 0.0
      %661 = vst.msk [vmem:[%s278] sm:$0xff] %vm483, %v653
      %662 = vst.msk [vmem:[%s278 + $0x8] sm:$0xff] %vm483, %v654
      %663 = vst.msk [vmem:[%s278 + $0x10] sm:$0xff] %vm483, %v655
      %664 = vst.msk [vmem:[%s278 + $0x18] sm:$0xff] %vm483, %v656
      %665 = vst.msk [vmem:[%s278 + $0x20] sm:$0xff] %vm483, %v657
      %666 = vst.msk [vmem:[%s278 + $0x28] sm:$0xff] %vm483, %v658
      %667 = vst.msk [vmem:[%s278 + $0x30] sm:$0xff] %vm483, %v659
      %668 = vst.msk [vmem:[%s278 + $0x38] sm:$0xff] %vm483, %v660
      %p669 = scmp.lt.s32.totalorder %s18, 1
      %s670 = scalar_select %p669, %s18, 1
      %s671 = smul.addr %s670, 8
      %s672 = smul.addr %s671, 8
      %s673 = scalar_lea.vmem %s7, %s672
      // Predicated region
      $region49: #{sern_forward.1} parent=47 // pred_check
        %p674 = pneg %p188
      $region50: #{sern_forward.1} parent=47 // pred_check_branch
        %676 = sbr.rel (%p674) target = $region52
      $region51: #{sern_forward.1} parent=47 // pred_region
        _
      $region52: #{sern_forward.1} parent=47 // pred_fallthru
        _
    $region48: #{sern_forward.1} parent=5 // pred_fallthru
      _
    %p677 = scmp.le.s32.totalorder 2, %s13
    // Predicated region
    $region53: #{sern_forward.1} parent=5 // pred_check
      %p678 = pneg %p677
    $region54: #{sern_forward.1} parent=5 // pred_check_branch
      %680 = sbr.rel (%p678) target = $region56
    $region55: #{sern_forward.1} parent=5 // pred_region
      %s681 = ssub.s32 %s13, 2
      // Predicated region
      $region57: #{sern_forward.1} parent=55 // pred_check
        %p682 = pneg %p194
      $region58: #{sern_forward.1} parent=55 // pred_check_branch
        %684 = sbr.rel (%p682) target = $region60
      $region59: #{sern_forward.1} parent=55 // pred_region
        %p685 = scmp.lt.s32.totalorder %s19, 1
        %s686 = scalar_select %p685, %s19, 1
        %s687 = smul.addr %s686, 8
        %s688 = smul.addr %s687, 8
        %s689 = scalar_lea.vmem %s7, %s688
      $region60: #{sern_forward.1} parent=55 // pred_fallthru
        _
    $region56: #{sern_forward.1} parent=5 // pred_fallthru
      _
  $region6: #{sern_forward.1} parent=0 // loop_footer
    %s17 = sadd.s32 1, %s13
  $region7: #{sern_forward.1} parent=0 // loop_footer_branch
    %12 = sbr.rel target = $region3
  $region8: #{sern_forward.1} parent=0 // loop_exit
    _

</llo_original>
